<compile_context>
chip_gen: v7x
topology: tpu7x:2x2x1
jax: 0.10.0
libtpu: 0.0.40
codegen_flags: <defaults>
</compile_context>

<pallas_src>
import functools

import jax
import jax.numpy as jnp
from jax import lax
from jax.experimental import pallas as pl
from jax.experimental.pallas import tpu as pltpu

N_BINS = 256
EMB_DIM = 32
KSIZE = 5
TARGET_TILE_ROWS = 2048   # sized for v7x's smaller VMEM; fine on v5e/v6e too


def _variance_embedding_kernel(x_ref, bounds_ref, m_ref, o_ref, *, seq_len):
    """One grid step: TILE_R = tile_g * seq_len rows (whole sequences only)."""
    R, C = o_ref.shape
    T = seq_len
    K = m_ref.shape[1] // C
    half = K // 2

    y = x_ref[...]                       # (R, 1) variance values
    left = bounds_ref[0:1, :]            # (1, n_bins)  == [-inf, bins]
    right = bounds_ref[1:2, :]           # (1, n_bins)  == [bins, +inf]

    # torch.bucketize(y, bins, right=False) == n  <=>  left[n] < y <= right[n].
    # Two VPU compares, no cross-lane reduction, no int index path.
    # NOTE: NaN inputs produce an all-zero row (torch would pick the last bin).
    one_hot = jnp.logical_and(y > left, y <= right).astype(m_ref.dtype)   # (R, n_bins)

    # Single fused MXU matmul: one-hot embedding lookup x all K conv taps
    # (+ conv bias, folded into the center tap block of M in the wrapper).
    P = jnp.dot(one_hot, m_ref[...], preferred_element_type=jnp.float32)  # (R, K*C)

    # Sequence-local position t of every row (rows are (seq, t) with t minor;
    # TILE_R is a multiple of T, so sequences never straddle a tile).
    t = lax.broadcasted_iota(jnp.int32, (R, 1), 0) % T                    # (R, 1)

    # Conv1d(k=K, pad=K//2): out[t] = sum_s P[t+s, (s+half)*C:...] over valid s.
    # Rolls are sublane shifts; rows whose source leaves [0, T) (sequence edges
    # or cross-sequence wrap inside the tile) are masked == conv zero-padding.
    # TODO(synk): if a bundle dump ever shows the XLU slot saturating on the
    # 32-lane tap slices + rolls, pad each tap block of M to 128 lanes.
    acc = P[:, half * C:(half + 1) * C]                                   # center tap (+bias)
    for k in range(K):
        s = k - half
        if s == 0:
            continue
        tap = jnp.roll(P[:, k * C:(k + 1) * C], -s, axis=0)               # tap[r] = P[r+s]
        valid = (t < T - s) if s > 0 else (t >= -s)                       # one-sided mask
        acc = acc + jnp.where(valid, tap, 0.0)

    o_ref[...] = jnp.tanh(acc)


def _tensorcores_per_chip():
    """2 TensorCores on v4 (megacore) / v7x, 1 on v5e/v6e; default 1."""
    try:
        kind = jax.devices()[0].device_kind.lower()
    except Exception:
        return 1
    return 2 if ("v7" in kind or "v4" in kind) else 1


def _choose_tile_seqs(B, T, n_cores, target_rows=TARGET_TILE_ROWS):
    """Sequences per tile: divides B, tile rows multiple of 8 (or == B*T),
    <= target_rows, and >= n_cores tiles so every TensorCore gets work."""
    for g in range(B, 0, -1):                       # prefer largest (fewest steps)
        if B % g:
            continue
        rows = g * T
        if rows % 8 != 0 and g != B:
            continue                                # (8,128) sublane constraint
        if B >= n_cores and (B // g) < n_cores:
            continue                                # keep all cores busy
        if rows > target_rows and g != 1:
            continue                                # bound per-tile VMEM
        return g
    return B                                        # fallback: single full tile


def variance_embedding(x, bins, emb_table, conv_w, conv_b, *,
                       log_scale=False, use_bf16_mxu=True):
    """x: (B, T) float32 -> (B, T, emb_dim) float32 ((B, emb_dim) when T == 1)."""
    B, T = x.shape
    n_bins, C = emb_table.shape
    K = conv_w.shape[2]
    half = K // 2

    if log_scale:
        x = jnp.log1p(x)

    # --- wrapper-side deep fusion: table @ every conv tap, bias folded in. ---
    #   M[n, k*C + o] = sum_i emb_table[n, i] * conv_w[o, i, k]
    M = jnp.einsum("ni,oik->nko", emb_table, conv_w,
                   precision=lax.Precision.HIGHEST).reshape(n_bins, K * C)
    # Every one-hot row sums to exactly 1 and the center tap is never masked,
    # so the bias comes out of the matmul for free.
    M = M.at[:, half * C:(half + 1) * C].add(conv_b[None, :].astype(M.dtype))
    M = M.astype(jnp.bfloat16 if use_bf16_mxu else jnp.float32)

    # Padded bucket boundaries: bucket n <=> left[n] < y <= right[n].
    neg_inf = jnp.array([-jnp.inf], dtype=jnp.float32)
    pos_inf = jnp.array([jnp.inf], dtype=jnp.float32)
    bins_f = bins.astype(jnp.float32)
    bounds = jnp.stack([jnp.concatenate([neg_inf, bins_f]),
                        jnp.concatenate([bins_f, pos_inf])], axis=0)      # (2, n_bins)

    # --- tiling / grid ---
    n_cores = _tensorcores_per_chip()
    tile_g = _choose_tile_seqs(B, T, n_cores)
    TILE_R = tile_g * T
    num_tiles = B // tile_g
    R_total = B * T

    x2 = x.reshape(R_total, 1).astype(jnp.float32)

    cost = pl.CostEstimate(
        flops=2 * R_total * n_bins * (K * C) + 3 * R_total * n_bins
              + (K - 1) * R_total * C,
        transcendentals=R_total * C,
        bytes_accessed=4 * (x2.size + bounds.size + R_total * C) + M.size * M.dtype.itemsize,
    )

    out = pl.pallas_call(
        functools.partial(_variance_embedding_kernel, seq_len=T),
        out_shape=jax.ShapeDtypeStruct((R_total, C), jnp.float32),
        grid=(num_tiles,),
        in_specs=[
            pl.BlockSpec((TILE_R, 1), lambda i: (i, 0)),       # x rows for this tile
            pl.BlockSpec((2, n_bins), lambda i: (0, 0)),       # boundaries (VMEM-resident)
            pl.BlockSpec((n_bins, K * C), lambda i: (0, 0)),   # fused table@taps (+bias), resident
        ],
        out_specs=pl.BlockSpec((TILE_R, C), lambda i: (i, 0)),
        compiler_params=pltpu.CompilerParams(dimension_semantics=("parallel",)),
        cost_estimate=cost,
    )(x2, bounds, M)

    out = out.reshape(B, T, C)
    if T == 1:                       # torch: .squeeze(1)
        out = out.reshape(B, C)
    return out
    # TODO(synk): x.ndim == 3 path (per-feature embedding + concat along dim 2,
    # no postprocessing) is not kernelized.


def reference(x, bins, emb_table, conv_w, conv_b):
    idx = jnp.searchsorted(bins, x, side="left")            # == torch.bucketize(right=False)
    emb = emb_table[idx]                                    # (B, T, C)
    z = jnp.transpose(emb, (0, 2, 1))                       # (B, C, T)
    z = lax.conv_general_dilated(z, conv_w, window_strides=(1,), padding=[(2, 2)],
                                 dimension_numbers=("NCH", "OIH", "NCH"),
                                 precision=lax.Precision.HIGHEST)
    z = z + conv_b[None, :, None]
    return jnp.tanh(jnp.transpose(z, (0, 2, 1)))            # (B, T, C)


if __name__ == "__main__":
    B, T = 2, 8
    v_min, v_max = 0.0, 1.0                                 # interval; log_scale=False

    key = jax.random.PRNGKey(0)
    k_x, k_emb, k_w, k_b = jax.random.split(key, 4)

    x = jax.random.uniform(k_x, (B, T), jnp.float32, minval=v_min, maxval=v_max)

    # Deterministic synthetic parameters (shapes from __init__).
    bins = jnp.linspace(v_min, v_max, N_BINS - 1, dtype=jnp.float32)               # (255,)
    emb_table = jax.random.normal(k_emb, (N_BINS, EMB_DIM), jnp.float32)            # nn.Embedding
    conv_w = 0.1 * jax.random.normal(k_w, (EMB_DIM, EMB_DIM, KSIZE), jnp.float32)   # (O, I, K)
    conv_b = 0.1 * jax.random.normal(k_b, (EMB_DIM,), jnp.float32)

    ref = reference(x, bins, emb_table, conv_w, conv_b)

    # Default path: bf16 fused matrix on the MXU (one-hot operand is exact in bf16).
    out = variance_embedding(x, bins, emb_table, conv_w, conv_b)
    out = jax.block_until_ready(out)
    assert out.shape == (B, T, EMB_DIM)
    err_bf16 = float(jnp.max(jnp.abs(out - ref)))
    assert err_bf16 < 3e-2, err_bf16

    # f32 exactness check alongside (headroom for reduced-precision MXU f32 passes).
    out_f32 = variance_embedding(x, bins, emb_table, conv_w, conv_b, use_bf16_mxu=False)
    out_f32 = jax.block_until_ready(out_f32)
    err_f32 = float(jnp.max(jnp.abs(out_f32 - ref)))
    assert err_f32 < 1e-2, err_f32

    print("KERNEL_OK")
</pallas_src>

<mosaic_0001>
module attributes {stable_mosaic.version = 11 : i64} {
  func.func @_variance_embedding_kernel(%arg0: i32, %arg1: memref<16x1xf32, #tpu.memory_space<vmem>>, %arg2: memref<2x256xf32, #tpu.memory_space<vmem>>, %arg3: memref<256x160xbf16, #tpu.memory_space<vmem>>, %arg4: memref<16x32xf32, #tpu.memory_space<vmem>>) attributes {dimension_semantics = [#tpu.dimension_semantics<parallel>], iteration_bounds = array<i64: 1>, scalar_prefetch = 0 : i64, scratch_operands = 0 : i64, tpu.core_type = #tpu.core_type<tc>, window_params = [{transform_indices = @transform_0, window_bounds = array<i64: 16, 1>}, {pipeline_mode = #tpu.pipeline_mode<synchronous>, transform_indices = @transform_1, window_bounds = array<i64: 2, 256>}, {pipeline_mode = #tpu.pipeline_mode<synchronous>, transform_indices = @transform_2, window_bounds = array<i64: 256, 160>}, {transform_indices = @transform_3, window_bounds = array<i64: 16, 32>}]} {
    %c0 = arith.constant 0 : index
    %c0_0 = arith.constant 0 : index
    %0 = vector.load %arg1[%c0, %c0_0] : memref<16x1xf32, #tpu.memory_space<vmem>>, vector<16x1xf32>
    %c0_1 = arith.constant 0 : index
    %c0_2 = arith.constant 0 : index
    %1 = vector.load %arg2[%c0_1, %c0_2] : memref<2x256xf32, #tpu.memory_space<vmem>>, vector<1x256xf32>
    %c1 = arith.constant 1 : index
    %c0_3 = arith.constant 0 : index
    %2 = vector.load %arg2[%c1, %c0_3] : memref<2x256xf32, #tpu.memory_space<vmem>>, vector<1x256xf32>
    %3 = vector.broadcast %0 : vector<16x1xf32> to vector<16x256xf32>
    %4 = vector.broadcast %1 : vector<1x256xf32> to vector<16x256xf32>
    %5 = arith.cmpf ogt, %3, %4 : vector<16x256xf32>
    %6 = vector.broadcast %0 : vector<16x1xf32> to vector<16x256xf32>
    %7 = vector.broadcast %2 : vector<1x256xf32> to vector<16x256xf32>
    %8 = arith.cmpf ole, %6, %7 : vector<16x256xf32>
    %9 = arith.andi %5, %8 : vector<16x256xi1>
    %10 = arith.extui %9 : vector<16x256xi1> to vector<16x256xi32>
    %11 = arith.sitofp %10 : vector<16x256xi32> to vector<16x256xf32>
    %12 = arith.truncf %11 : vector<16x256xf32> to vector<16x256xbf16>
    %c0_4 = arith.constant 0 : index
    %c0_5 = arith.constant 0 : index
    %13 = vector.load %arg3[%c0_4, %c0_5] : memref<256x160xbf16, #tpu.memory_space<vmem>>, vector<256x160xbf16>
    %cst = arith.constant dense<0.000000e+00> : vector<16x160xf32>
    %14 = tpu.matmul %12, %13, %cst {dimension_numbers = #tpu.dot_dimension_numbers<[1], [0], [0], [1], [0, 0, 1, 1], [], []>} : vector<16x256xbf16>, vector<256x160xbf16>, vector<16x160xf32> -> vector<16x160xf32>
    %15 = tpu.iota {dimensions = array<i32: 0>} : vector<16x1xi32>
    %c8_i32 = arith.constant 8 : i32
    %c0_i32 = arith.constant 0 : i32
    %16 = arith.cmpi eq, %c8_i32, %c0_i32 : i32
    %c1_i32 = arith.constant 1 : i32
    %17 = arith.select %16, %c1_i32, %c8_i32 : i32
    %18 = vector.broadcast %17 : i32 to vector<16x1xi32>
    %19 = arith.remsi %15, %18 : vector<16x1xi32>
    %c0_i32_6 = arith.constant 0 : i32
    %20 = vector.broadcast %c0_i32_6 : i32 to vector<16x1xi32>
    %21 = arith.cmpi ne, %19, %20 : vector<16x1xi32>
    %c0_i32_7 = arith.constant 0 : i32
    %22 = vector.broadcast %c0_i32_7 : i32 to vector<16x1xi32>
    %23 = arith.cmpi slt, %19, %22 : vector<16x1xi32>
    %c0_i32_8 = arith.constant 0 : i32
    %24 = arith.cmpi slt, %17, %c0_i32_8 : i32
    %25 = vector.broadcast %24 : i1 to vector<16x1xi1>
    %26 = vector.broadcast %25 : vector<16x1xi1> to vector<16x1xi1>
    %27 = arith.xori %23, %26 : vector<16x1xi1>
    %28 = arith.andi %27, %21 : vector<16x1xi1>
    %29 = vector.broadcast %17 : i32 to vector<16x1xi32>
    %30 = arith.addi %19, %29 : vector<16x1xi32>
    %31 = arith.select %28, %30, %19 : vector<16x1xi1>, vector<16x1xi32>
    %32 = vector.extract_strided_slice %14 {offsets = [0, 64], sizes = [16, 32], strides = [1, 1]} : vector<16x160xf32> to vector<16x32xf32>
    %33 = vector.extract_strided_slice %14 {offsets = [0, 0], sizes = [16, 32], strides = [1, 1]} : vector<16x160xf32> to vector<16x32xf32>
    %34 = vector.extract_strided_slice %33 {offsets = [14, 0], sizes = [2, 32], strides = [1, 1]} : vector<16x32xf32> to vector<2x32xf32>
    %35 = vector.extract_strided_slice %33 {offsets = [0, 0], sizes = [14, 32], strides = [1, 1]} : vector<16x32xf32> to vector<14x32xf32>
    %36 = tpu.concatenate %34, %35 in 0 : vector<2x32xf32>, vector<14x32xf32> -> vector<16x32xf32>
    %c2_i32 = arith.constant 2 : i32
    %37 = vector.broadcast %c2_i32 : i32 to vector<16x1xi32>
    %38 = arith.cmpi sge, %31, %37 : vector<16x1xi32>
    %cst_9 = arith.constant 0.000000e+00 : f32
    %39 = vector.shape_cast %38 : vector<16x1xi1> to vector<16x1xi1>
    %40 = vector.broadcast %39 : vector<16x1xi1> to vector<16x32xi1>
    %41 = vector.broadcast %cst_9 : f32 to vector<16x32xf32>
    %42 = arith.select %40, %36, %41 : vector<16x32xi1>, vector<16x32xf32>
    %43 = arith.addf %32, %42 : vector<16x32xf32>
    %44 = vector.extract_strided_slice %14 {offsets = [0, 32], sizes = [16, 32], strides = [1, 1]} : vector<16x160xf32> to vector<16x32xf32>
    %45 = vector.extract_strided_slice %44 {offsets = [15, 0], sizes = [1, 32], strides = [1, 1]} : vector<16x32xf32> to vector<1x32xf32>
    %46 = vector.extract_strided_slice %44 {offsets = [0, 0], sizes = [15, 32], strides = [1, 1]} : vector<16x32xf32> to vector<15x32xf32>
    %47 = tpu.concatenate %45, %46 in 0 : vector<1x32xf32>, vector<15x32xf32> -> vector<16x32xf32>
    %c1_i32_10 = arith.constant 1 : i32
    %48 = vector.broadcast %c1_i32_10 : i32 to vector<16x1xi32>
    %49 = arith.cmpi sge, %31, %48 : vector<16x1xi32>
    %cst_11 = arith.constant 0.000000e+00 : f32
    %50 = vector.shape_cast %49 : vector<16x1xi1> to vector<16x1xi1>
    %51 = vector.broadcast %50 : vector<16x1xi1> to vector<16x32xi1>
    %52 = vector.broadcast %cst_11 : f32 to vector<16x32xf32>
    %53 = arith.select %51, %47, %52 : vector<16x32xi1>, vector<16x32xf32>
    %54 = arith.addf %43, %53 : vector<16x32xf32>
    %55 = vector.extract_strided_slice %14 {offsets = [0, 96], sizes = [16, 32], strides = [1, 1]} : vector<16x160xf32> to vector<16x32xf32>
    %56 = vector.extract_strided_slice %55 {offsets = [1, 0], sizes = [15, 32], strides = [1, 1]} : vector<16x32xf32> to vector<15x32xf32>
    %57 = vector.extract_strided_slice %55 {offsets = [0, 0], sizes = [1, 32], strides = [1, 1]} : vector<16x32xf32> to vector<1x32xf32>
    %58 = tpu.concatenate %56, %57 in 0 : vector<15x32xf32>, vector<1x32xf32> -> vector<16x32xf32>
    %c7_i32 = arith.constant 7 : i32
    %59 = vector.broadcast %c7_i32 : i32 to vector<16x1xi32>
    %60 = arith.cmpi slt, %31, %59 : vector<16x1xi32>
    %cst_12 = arith.constant 0.000000e+00 : f32
    %61 = vector.shape_cast %60 : vector<16x1xi1> to vector<16x1xi1>
    %62 = vector.broadcast %61 : vector<16x1xi1> to vector<16x32xi1>
    %63 = vector.broadcast %cst_12 : f32 to vector<16x32xf32>
    %64 = arith.select %62, %58, %63 : vector<16x32xi1>, vector<16x32xf32>
    %65 = arith.addf %54, %64 : vector<16x32xf32>
    %66 = vector.extract_strided_slice %14 {offsets = [0, 128], sizes = [16, 32], strides = [1, 1]} : vector<16x160xf32> to vector<16x32xf32>
    %67 = vector.extract_strided_slice %66 {offsets = [2, 0], sizes = [14, 32], strides = [1, 1]} : vector<16x32xf32> to vector<14x32xf32>
    %68 = vector.extract_strided_slice %66 {offsets = [0, 0], sizes = [2, 32], strides = [1, 1]} : vector<16x32xf32> to vector<2x32xf32>
    %69 = tpu.concatenate %67, %68 in 0 : vector<14x32xf32>, vector<2x32xf32> -> vector<16x32xf32>
    %c6_i32 = arith.constant 6 : i32
    %70 = vector.broadcast %c6_i32 : i32 to vector<16x1xi32>
    %71 = arith.cmpi slt, %31, %70 : vector<16x1xi32>
    %cst_13 = arith.constant 0.000000e+00 : f32
    %72 = vector.shape_cast %71 : vector<16x1xi1> to vector<16x1xi1>
    %73 = vector.broadcast %72 : vector<16x1xi1> to vector<16x32xi1>
    %74 = vector.broadcast %cst_13 : f32 to vector<16x32xf32>
    %75 = arith.select %73, %69, %74 : vector<16x32xi1>, vector<16x32xf32>
    %76 = arith.addf %65, %75 : vector<16x32xf32>
    %77 = math.tanh %76 : vector<16x32xf32>
    %c0_14 = arith.constant 0 : index
    %c0_15 = arith.constant 0 : index
    %78 = vector.load %arg4[%c0_14, %c0_15] : memref<16x32xf32, #tpu.memory_space<vmem>>, vector<16x32xf32>
    tpu.vector_store %arg4[%c0_14, %c0_15], %77 {strides = array<i32>} : memref<16x32xf32, #tpu.memory_space<vmem>>, vector<16x32xf32>,
    return
  }
  func.func @transform_0(%arg0: i32) -> (i32, i32) {
    %c0_i32 = arith.constant 0 : i32
    %c0_i32_0 = arith.constant 0 : i32
    return %arg0, %c0_i32 : i32, i32
  }
  func.func @transform_1(%arg0: i32) -> (i32, i32) {
    %c0_i32 = arith.constant 0 : i32
    %c0_i32_0 = arith.constant 0 : i32
    %c0_i32_1 = arith.constant 0 : i32
    return %c0_i32, %c0_i32_0 : i32, i32
  }
  func.func @transform_2(%arg0: i32) -> (i32, i32) {
    %c0_i32 = arith.constant 0 : i32
    %c0_i32_0 = arith.constant 0 : i32
    %c0_i32_1 = arith.constant 0 : i32
    return %c0_i32, %c0_i32_0 : i32, i32
  }
  func.func @transform_3(%arg0: i32) -> (i32, i32) {
    %c0_i32 = arith.constant 0 : i32
    %c0_i32_0 = arith.constant 0 : i32
    return %arg0, %c0_i32 : i32, i32
  }
}

</mosaic_0001>

<llo_original>
// kernel: tpu_custom_call.1
$region0: #{tpu_custom_call.1}
  #allocation0 [shape = 'u32[]', space=smem, size = 0x4, offset = 0x4, fixed_abs, tag = 'smem constant byte address 0x4 - core index']
  #allocation1 [shape = 'u32[144,128]{1,0:T(1,128)}', space=vmem, size = 0x12000, scoped, tag = 'internal scratch']
  %s0 = inlined_call_operand.vmem [shape: f32[16,1], index: 0, kind: input, shape index: {}]
  %s1 = inlined_call_operand.vmem [shape: f32[2,256], index: 1, kind: input, shape index: {}]
  %s2 = inlined_call_operand.vmem [shape: bf16[256,160], index: 2, kind: input, shape index: {}]
  %s3 = inlined_call_operand.hbm [shape: f32[16,32], index: 3, kind: output, shape index: {}]
  %s4 = sld [smem:[#allocation0]]
  $region22: #{tpu_custom_call.1} parent=0
    _
  %s6 = ssub.s32 1, %s4
  %s7 = scalar_select 0, %s6, %s4
  $region1: #{tpu_custom_call.1} parent=0
    #allocation2 [shape = 'u8[8192]{0}', space=vmem, size = 0x2000, scoped, tag = 'output window, operand 0, single buffered']
    #allocation3 [shape = 's32[1]{0}', space=sflag, size = 0x4, scoped, tag = 'scoped memory for tpu_custom_call.1']
    %8 = vsyncpa [#allocation3], 0
    // Predicated region
    $region2: #{tpu_custom_call.1} parent=1 // pred_check
      _
    $region3: #{tpu_custom_call.1} parent=1 // pred_check_branch
      %10 = sbr.rel (0) target = $region5
    $region4: #{tpu_custom_call.1} parent=1 // pred_region
      _
    $region5: #{tpu_custom_call.1} parent=1 // pred_fallthru
      _
    // Predicated region
    $region6: #{tpu_custom_call.1} parent=1 // pred_check
      _
    $region7: #{tpu_custom_call.1} parent=1 // pred_check_branch
      %12 = sbr.rel (0) target = $region9
    $region8: #{tpu_custom_call.1} parent=1 // pred_region
      _
    $region9: #{tpu_custom_call.1} parent=1 // pred_fallthru
      _
    // Predicated region
    $region10: #{tpu_custom_call.1} parent=1 // pred_check
      _
    $region11: #{tpu_custom_call.1} parent=1 // pred_check_branch
      %14 = sbr.rel (0) target = $region13
    $region12: #{tpu_custom_call.1} parent=1 // pred_region
      _
    $region13: #{tpu_custom_call.1} parent=1 // pred_fallthru
      _
    %v15 = vld [vmem:[%s0] sm:$0xff]
    %v16 = vld [vmem:[%s0 + $0x8] sm:$0xff]
    %v17 = vld [vmem:[%s1] ss:$2 sm:$0x3]
    %s18 = scalar_lea.vmem %s1, 1
    %v19 = vld [vmem:[%s18] ss:$2 sm:$0x3]
    %21 = vset.pattern.permute.xlu0 0
    %22 = vperm.xlu0 %21, %v15
    %v23 = vpop.permute.xlu0 %22
    %26 = vset.pattern.permute.xlu0 0
    %27 = vperm.xlu0 %26, %v16
    %v28 = vpop.permute.xlu0 %27
    %v31 = vlaneseq
    %v32 = vshrl.u32 %v31, 7
    %v33 = vsub.s32 0, %v32
    %v34 = vrot.slane %v17, %v33
    %v35 = vlaneseq
    %v36 = vshrl.u32 %v35, 7
    %v37 = vsub.s32 1, %v36
    %v38 = vrot.slane %v17, %v37
    %vm41 = vcmp.gt.f32.partialorder %v23, %v34
    %vm42 = vcmp.gt.f32.partialorder %v23, %v38
    %vm43 = vcmp.gt.f32.partialorder %v28, %v34
    %vm44 = vcmp.gt.f32.partialorder %v28, %v38
    %v46 = vlaneseq
    %v47 = vshrl.u32 %v46, 7
    %v48 = vsub.s32 0, %v47
    %v49 = vrot.slane %v19, %v48
    %v50 = vlaneseq
    %v51 = vshrl.u32 %v50, 7
    %v52 = vsub.s32 1, %v51
    %v53 = vrot.slane %v19, %v52
    %vm56 = vcmp.le.f32.partialorder %v23, %v49
    %vm57 = vcmp.le.f32.partialorder %v23, %v53
    %vm58 = vcmp.le.f32.partialorder %v28, %v49
    %vm59 = vcmp.le.f32.partialorder %v28, %v53
    %vm60 = vmand %vm41, %vm56
    %vm61 = vmand %vm42, %vm57
    %vm62 = vmand %vm43, %vm58
    %vm63 = vmand %vm44, %vm59
    %v64 = vsel %vm60, 1, 0
    %v65 = vsel %vm61, 1, 0
    %v66 = vsel %vm62, 1, 0
    %v67 = vsel %vm63, 1, 0
    %v68 = vcvt.s32.f32 %v64
    %v69 = vcvt.s32.f32 %v65
    %v70 = vcvt.s32.f32 %v66
    %v71 = vcvt.s32.f32 %v67
    %v72 = vpack.c.bf16 %v70, %v68
    %v73 = vpack.c.bf16 %v71, %v69
    %v74 = vld [vmem:[%s2] sm:$0xff]
    %v75 = vld [vmem:[%s2 + $0x8] sm:$0xff]
    %v76 = vld [vmem:[%s2 + $0x10] sm:$0xff]
    %v77 = vld [vmem:[%s2 + $0x18] sm:$0xff]
    %v78 = vld [vmem:[%s2 + $0x20] sm:$0xff]
    %v79 = vld [vmem:[%s2 + $0x28] sm:$0xff]
    %v80 = vld [vmem:[%s2 + $0x30] sm:$0xff]
    %v81 = vld [vmem:[%s2 + $0x38] sm:$0xff]
    %v82 = vld [vmem:[%s2 + $0x40] sm:$0xff]
    %v83 = vld [vmem:[%s2 + $0x48] sm:$0xff]
    %v84 = vld [vmem:[%s2 + $0x50] sm:$0xff]
    %v85 = vld [vmem:[%s2 + $0x58] sm:$0xff]
    %v86 = vld [vmem:[%s2 + $0x60] sm:$0xff]
    %v87 = vld [vmem:[%s2 + $0x68] sm:$0xff]
    %v88 = vld [vmem:[%s2 + $0x70] sm:$0xff]
    %v89 = vld [vmem:[%s2 + $0x78] sm:$0xff]
    %v90 = vld [vmem:[%s2 + $0x80] sm:$0xff]
    %v91 = vld [vmem:[%s2 + $0x88] sm:$0xff]
    %v92 = vld [vmem:[%s2 + $0x90] sm:$0xff]
    %v93 = vld [vmem:[%s2 + $0x98] sm:$0xff]
    %v94 = vld [vmem:[%s2 + $0xa0] sm:$0xff]
    %v95 = vld [vmem:[%s2 + $0xa8] sm:$0xff]
    %v96 = vld [vmem:[%s2 + $0xb0] sm:$0xff]
    %v97 = vld [vmem:[%s2 + $0xb8] sm:$0xff]
    %v98 = vld [vmem:[%s2 + $0xc0] sm:$0xff]
    %v99 = vld [vmem:[%s2 + $0xc8] sm:$0xff]
    %v100 = vld [vmem:[%s2 + $0xd0] sm:$0xff]
    %v101 = vld [vmem:[%s2 + $0xd8] sm:$0xff]
    %v102 = vld [vmem:[%s2 + $0xe0] sm:$0xff]
    %v103 = vld [vmem:[%s2 + $0xe8] sm:$0xff]
    %v104 = vld [vmem:[%s2 + $0xf0] sm:$0xff]
    %v105 = vld [vmem:[%s2 + $0xf8] sm:$0xff]
    %v138 = vunpack.c.l.b16 %v74
    %v139 = vunpack.c.h.b16 %v74
    %v140 = vunpack.c.l.b16 %v75
    %v141 = vunpack.c.h.b16 %v75
    %v142 = vunpack.c.l.b16 %v76
    %v143 = vunpack.c.h.b16 %v76
    %v144 = vunpack.c.l.b16 %v77
    %v145 = vunpack.c.h.b16 %v77
    %v146 = vunpack.c.l.b16 %v78
    %v147 = vunpack.c.h.b16 %v78
    %v148 = vunpack.c.l.b16 %v79
    %v149 = vunpack.c.h.b16 %v79
    %v150 = vunpack.c.l.b16 %v80
    %v151 = vunpack.c.h.b16 %v80
    %v152 = vunpack.c.l.b16 %v81
    %v153 = vunpack.c.h.b16 %v81
    %v154 = vunpack.c.l.b16 %v82
    %v155 = vunpack.c.h.b16 %v82
    %v156 = vunpack.c.l.b16 %v83
    %v157 = vunpack.c.h.b16 %v83
    %v158 = vunpack.c.l.b16 %v84
    %v159 = vunpack.c.h.b16 %v84
    %v160 = vunpack.c.l.b16 %v85
    %v161 = vunpack.c.h.b16 %v85
    %v162 = vunpack.c.l.b16 %v86
    %v163 = vunpack.c.h.b16 %v86
    %v164 = vunpack.c.l.b16 %v87
    %v165 = vunpack.c.h.b16 %v87
    %v166 = vunpack.c.l.b16 %v88
    %v167 = vunpack.c.h.b16 %v88
    %v168 = vunpack.c.l.b16 %v89
    %v169 = vunpack.c.h.b16 %v89
    %v170 = vunpack.c.l.b16 %v90
    %v171 = vunpack.c.h.b16 %v90
    %v172 = vunpack.c.l.b16 %v91
    %v173 = vunpack.c.h.b16 %v91
    %v174 = vunpack.c.l.b16 %v92
    %v175 = vunpack.c.h.b16 %v92
    %v176 = vunpack.c.l.b16 %v93
    %v177 = vunpack.c.h.b16 %v93
    %v178 = vunpack.c.l.b16 %v94
    %v179 = vunpack.c.h.b16 %v94
    %v180 = vunpack.c.l.b16 %v95
    %v181 = vunpack.c.h.b16 %v95
    %v182 = vunpack.c.l.b16 %v96
    %v183 = vunpack.c.h.b16 %v96
    %v184 = vunpack.c.l.b16 %v97
    %v185 = vunpack.c.h.b16 %v97
    %v186 = vunpack.c.l.b16 %v98
    %v187 = vunpack.c.h.b16 %v98
    %v188 = vunpack.c.l.b16 %v99
    %v189 = vunpack.c.h.b16 %v99
    %v190 = vunpack.c.l.b16 %v100
    %v191 = vunpack.c.h.b16 %v100
    %v192 = vunpack.c.l.b16 %v101
    %v193 = vunpack.c.h.b16 %v101
    %v194 = vunpack.c.l.b16 %v102
    %v195 = vunpack.c.h.b16 %v102
    %v196 = vunpack.c.l.b16 %v103
    %v197 = vunpack.c.h.b16 %v103
    %v198 = vunpack.c.l.b16 %v104
    %v199 = vunpack.c.h.b16 %v104
    %v200 = vunpack.c.l.b16 %v105
    %v201 = vunpack.c.h.b16 %v105
    %v202 = vpack.c.b16 %v140, %v138
    %v203 = vpack.c.b16 %v141, %v139
    %v204 = vpack.c.b16 %v144, %v142
    %v205 = vpack.c.b16 %v145, %v143
    %v206 = vpack.c.b16 %v148, %v146
    %v207 = vpack.c.b16 %v149, %v147
    %v208 = vpack.c.b16 %v152, %v150
    %v209 = vpack.c.b16 %v153, %v151
    %v210 = vpack.c.b16 %v156, %v154
    %v211 = vpack.c.b16 %v157, %v155
    %v212 = vpack.c.b16 %v160, %v158
    %v213 = vpack.c.b16 %v161, %v159
    %v214 = vpack.c.b16 %v164, %v162
    %v215 = vpack.c.b16 %v165, %v163
    %v216 = vpack.c.b16 %v168, %v166
    %v217 = vpack.c.b16 %v169, %v167
    %v218 = vpack.c.b16 %v172, %v170
    %v219 = vpack.c.b16 %v173, %v171
    %v220 = vpack.c.b16 %v176, %v174
    %v221 = vpack.c.b16 %v177, %v175
    %v222 = vpack.c.b16 %v180, %v178
    %v223 = vpack.c.b16 %v181, %v179
    %v224 = vpack.c.b16 %v184, %v182
    %v225 = vpack.c.b16 %v185, %v183
    %v226 = vpack.c.b16 %v188, %v186
    %v227 = vpack.c.b16 %v189, %v187
    %v228 = vpack.c.b16 %v192, %v190
    %v229 = vpack.c.b16 %v193, %v191
    %v230 = vpack.c.b16 %v196, %v194
    %v231 = vpack.c.b16 %v197, %v195
    %v232 = vpack.c.b16 %v200, %v198
    %v233 = vpack.c.b16 %v201, %v199
    %266 = vmatprep.subr.bf16.mxu0 %v203
    %267 = vmatpush1.bf16.msra.mxu0 %v202
    %268 = vmatprep.subr.bf16.mxu0 %v205
    %269 = vmatpush1.bf16.msra.mxu0 %v204
    %270 = vmatprep.subr.bf16.mxu0 %v207
    %271 = vmatpush1.bf16.msra.mxu0 %v206
    %272 = vmatprep.subr.bf16.mxu0 %v209
    %273 = vmatpush1.bf16.msra.mxu0 %v208
    %274 = vmatprep.subr.bf16.mxu0 %v211
    %275 = vmatpush1.bf16.msra.mxu0 %v210
    %276 = vmatprep.subr.bf16.mxu0 %v213
    %277 = vmatpush1.bf16.msra.mxu0 %v212
    %278 = vmatprep.subr.bf16.mxu0 %v215
    %279 = vmatpush1.bf16.msra.mxu0 %v214
    %280 = vmatprep.subr.bf16.mxu0 %v217
    %281 = vmatpush1.bf16.msra.mxu0 %v216
    %282 = vmatprep.subr.bf16.mxu0 %v219
    %283 = vmatpush1.bf16.msra.mxu0 %v218
    %284 = vmatprep.subr.bf16.mxu0 %v221
    %285 = vmatpush1.bf16.msra.mxu0 %v220
    %286 = vmatprep.subr.bf16.mxu0 %v223
    %287 = vmatpush1.bf16.msra.mxu0 %v222
    %288 = vmatprep.subr.bf16.mxu0 %v225
    %289 = vmatpush1.bf16.msra.mxu0 %v224
    %290 = vmatprep.subr.bf16.mxu0 %v227
    %291 = vmatpush1.bf16.msra.mxu0 %v226
    %292 = vmatprep.subr.bf16.mxu0 %v229
    %293 = vmatpush1.bf16.msra.mxu0 %v228
    %294 = vmatprep.subr.bf16.mxu0 %v231
    %295 = vmatpush1.bf16.msra.mxu0 %v230
    %296 = vmatprep.subr.bf16.mxu0 %v233
    %297 = vmatpush1.bf16.msra.mxu0 %v232
    %298 = vmatprep.mubr.bf16.mxu0 %v73
    %299 = vmatmul.mubr.bf16.gmra.mrb[0].mxu0 %v72
    %v300 = vpop.f32.mrb[0].mxu0
    %v301 = vadd.f32 0.0, %v300
    %v302 = vpop.f32.mrb[0].mxu0
    %v303 = vadd.f32 0.0, %v302
    %v304 = vpop.f32.mrb[0].mxu0
    %v305 = vadd.f32 0.0, %v304
    %v306 = vpop.f32.mrb[0].mxu0
    %v307 = vadd.f32 0.0, %v306
    %308 = vdwg.mxu0
    %v309 = vlaneseq
    %v310 = vshrl.u32 %v309, 7
    %v311 = vadd.s32 %v310, 8
    %vm312 = vcmp.lt.s32.totalorder %v310, 0
    %v313 = vsub.s32 0, %v310
    %v314 = vsel %vm312, %v313, %v310
    %v315 = vshrl.u32 %v314, 3
    %v316 = vand.u32 %v314, 7
    %v317 = vsub.s32 0, %v316
    %v318 = vsel %vm312, %v317, %v316
    %vm319 = vcmp.lt.s32.totalorder %v311, 0
    %v320 = vsub.s32 0, %v311
    %v321 = vsel %vm319, %v320, %v311
    %v322 = vshrl.u32 %v321, 3
    %v323 = vand.u32 %v321, 7
    %v324 = vsub.s32 0, %v323
    %v325 = vsel %vm319, %v324, %v323
    %vm326 = vcmp.ne.s32.totalorder %v318, 0
    %vm327 = vcmp.ne.s32.totalorder %v325, 0
    %vm328 = vcmp.lt.s32.totalorder %v318, 0
    %vm329 = vcmp.lt.s32.totalorder %v325, 0
    %vm330 = vmand %vm328, %vm326
    %vm331 = vmand %vm329, %vm327
    %v332 = vadd.s32 %v318, 8
    %v333 = vadd.s32 %v325, 8
    %v334 = vsel %vm330, %v332, %v318
    %v335 = vsel %vm331, %v333, %v325
    %v337 = vrot.slane %v305, 6
    %vm340 = vcmask 1041408
    %v341 = vrot.slane %v301, 6
    %v342 = vsel %vm340, %v341, %v337
    %v345 = vsel %vm340, %v337, %v341
    %vm346 = vcmp.ge.s32.totalorder %v334, 2
    %vm347 = vcmp.ge.s32.totalorder %v335, 2
    %v348 = vsel %vm346, 1, 0
    %v349 = vsel %vm347, 1, 0
    %vm350 = vcmp.eq.s32.totalorder %v348, 1
    %vm351 = vcmp.eq.s32.totalorder %v349, 1
    %v352 = vsel %vm350, %v345, 0.0
    %v353 = vsel %vm351, %v342, 0.0
    %356 = vrot.lane.b32.xlu0 %v352, 64
    %v357 = vpop.permute.xlu0 %356
    %358 = vrot.lane.b32.xlu0 %v353, 64
    %v359 = vpop.permute.xlu0 %358
    %v362 = vadd.f32 %v301, %v357
    %v363 = vadd.f32 %v305, %v359
    %v364 = vrot.slane %v305, 7
    %vm366 = vcmask 1040384
    %v367 = vrot.slane %v301, 7
    %v368 = vsel %vm366, %v367, %v364
    %v371 = vsel %vm366, %v364, %v367
    %vm372 = vcmp.ge.s32.totalorder %v334, 1
    %vm373 = vcmp.ge.s32.totalorder %v335, 1
    %v374 = vsel %vm372, 1, 0
    %v375 = vsel %vm373, 1, 0
    %vm376 = vcmp.eq.s32.totalorder %v374, 1
    %vm377 = vcmp.eq.s32.totalorder %v375, 1
    %v378 = vsel %vm376, %v371, 0.0
    %v379 = vsel %vm377, %v368, 0.0
    %382 = vrot.lane.b32.xlu0 %v378, 32
    %v383 = vpop.permute.xlu0 %382
    %384 = vrot.lane.b32.xlu0 %v379, 32
    %v385 = vpop.permute.xlu0 %384
    %v388 = vadd.f32 %v362, %v383
    %v389 = vadd.f32 %v363, %v385
    %vm390 = vcmask 1046528
    %v391 = vrot.slane %v301, 1
    %v392 = vrot.slane %v305, 1
    %v393 = vsel %vm390, %v391, %v392
    %v397 = vsel %vm390, %v392, %v391
    %vm398 = vcmp.lt.s32.totalorder %v334, 7
    %vm399 = vcmp.lt.s32.totalorder %v335, 7
    %v400 = vsel %vm398, 1, 0
    %v401 = vsel %vm399, 1, 0
    %vm402 = vcmp.eq.s32.totalorder %v400, 1
    %vm403 = vcmp.eq.s32.totalorder %v401, 1
    %v404 = vsel %vm402, %v393, 0.0
    %v405 = vsel %vm403, %v397, 0.0
    %408 = vrot.lane.b32.xlu0 %v404, 96
    %v409 = vpop.permute.xlu0 %408
    %410 = vrot.lane.b32.xlu0 %v405, 96
    %v411 = vpop.permute.xlu0 %410
    %v414 = vadd.f32 %v388, %v409
    %v415 = vadd.f32 %v389, %v411
    %vm418 = vcmask 1045504
    %v419 = vrot.slane %v303, 2
    %v420 = vrot.slane %v307, 2
    %v421 = vsel %vm418, %v419, %v420
    %v425 = vsel %vm418, %v420, %v419
    %vm426 = vcmp.lt.s32.totalorder %v334, 6
    %vm427 = vcmp.lt.s32.totalorder %v335, 6
    %v428 = vsel %vm426, 1, 0
    %v429 = vsel %vm427, 1, 0
    %vm430 = vcmp.eq.s32.totalorder %v428, 1
    %vm431 = vcmp.eq.s32.totalorder %v429, 1
    %v432 = vsel %vm430, %v421, 0.0
    %v433 = vsel %vm431, %v425, 0.0
    %436 = vrot.lane.b32.xlu0 %v432, 64
    %v437 = vpop.permute.xlu0 %436
    %438 = vrot.lane.b32.xlu0 %v433, 64
    %v439 = vpop.permute.xlu0 %438
    %v442 = vadd.f32 %v414, %v437
    %v443 = vadd.f32 %v415, %v439
    %v444 = vtanh.pop %v442
    %v445 = vtanh.pop %v443
    %448 = vrot.lane.b32.xlu0 %v444, 64
    %v449 = vpop.permute.xlu0 %448
    %450 = vrot.lane.b32.xlu0 %v445, 64
    %v451 = vpop.permute.xlu0 %450
    %vm454 = vcmask 261120
    %455 = vst.msk [vmem:[#allocation2] sm:$0xff] %vm454, %v449
    %456 = vst.msk [vmem:[#allocation2 + $0x8] sm:$0xff] %vm454, %v451
    // Predicated region
    $region14: #{tpu_custom_call.1} parent=1 // pred_check
      _
    $region15: #{tpu_custom_call.1} parent=1 // pred_check_branch
      %458 = sbr.rel (0) target = $region17
    $region16: #{tpu_custom_call.1} parent=1 // pred_region
      %s460 = ssub.s32 256, 256
      %461 = vsyncadd [#allocation3], %s460
      %s462 = sshll.u32 [#allocation2], 4
      %s463 = int_to_ptr.vmem [resolvable:$true] %s462
      %468 = dma.vmem_to_hbm [thread:$0]  %s463, 256, %s3, [#allocation3], 128, 128, 8
    $region17: #{tpu_custom_call.1} parent=1 // pred_fallthru
      _
    // Predicated region
    $region18: #{tpu_custom_call.1} parent=1 // pred_check
      _
    $region19: #{tpu_custom_call.1} parent=1 // pred_check_branch
      %470 = sbr.rel (0) target = $region21
    $region20: #{tpu_custom_call.1} parent=1 // pred_region
      %471 = dma.done [#allocation3], 256
    $region21: #{tpu_custom_call.1} parent=1 // pred_fallthru
      _
    %472 = vsyncpa [#allocation3], 1

</llo_original>
